<compile_context>
chip_gen: v6e
topology: v6e:2x2x1
jax: 0.10.0
libtpu: 0.0.40
codegen_flags: <defaults>
</compile_context>

<pallas_src>
import jax
import jax.numpy as jnp
import numpy as np
from jax.experimental import pallas as pl
from jax.experimental.pallas import tpu as pltpu


_LANE = 128
_SUBLANE = 8


def _round_up(v, m):
    return (v + m - 1) // m * m


def _block_budget_bytes():
    """Per-output-block VMEM budget (pipeline double-buffers => ~2x resident)."""
    try:
        vmem = pltpu.get_tpu_info().vmem_capacity_bytes
    except Exception:
        vmem = 64 * 1024 * 1024  # conservative (v7x)
    # ~8 MiB blocks on 128-MiB-VMEM generations (v5e/v6e), ~4 MiB on v7x.
    return 8 * 1024 * 1024 if vmem >= 96 * 1024 * 1024 else 4 * 1024 * 1024


def _vmem_limit(block_bytes_total):
    """Scoped-VMEM limit from the actual per-step footprint (double-buffered)."""
    want = 2 * block_bytes_total + (4 << 20)
    return int(min(max(want, 16 << 20), 48 << 20))


# ----------------------------------------------------------------------------
# Path A: small C (2*C < 128) — flattened lane-dense output, MXU lane expansion
# ----------------------------------------------------------------------------
def _flat_kernel(x_ref, z_ref, e_ref, o_ref):
    # x_ref : (TA, C)   rows of x for this output row tile
    # z_ref : (1, TN)   column block of flattened z = cat((x, x), 1)   (resident)
    # e_ref : (C, TN)   0/1 expansion matrix block: E[b, j] = (j // 2C == b)
    # o_ref : (TA, TN)  lane-dense output slab block
    sinx = jnp.sin(x_ref[...])                              # (TA, C) — EUP, tiny
    # Lane expansion on the (otherwise idle) MXU instead of a VPU select chain:
    #   wide[a, j] = sinx[a, j // (2C)].  HIGHEST keeps f32 exact (E is 0/1).
    wide = jnp.dot(sinx, e_ref[...],
                   preferred_element_type=jnp.float32,
                   precision=jax.lax.Precision.HIGHEST)      # (TA, TN)
    v = wide + z_ref[...]                                    # sublane-broadcast add
    # One EUP op per element: sigmoid(v) = 0.5 * tanh(v / 2) + 0.5
    o_ref[...] = (0.5 * jnp.tanh(0.5 * v) + 0.5).astype(o_ref.dtype)


def _pick_flat_tiles(B, n_pad, itemsize, budget):
    # Column tile: multiple of 128 lanes, capped so >= 8 rows fit the budget.
    max_tn = max(_LANE, (budget // (_SUBLANE * itemsize)) // _LANE * _LANE)
    tn = min(n_pad, max_tn)
    # Row tile: as many rows as the budget allows; ragged last block is fine.
    rows_fit = max(_SUBLANE, budget // (tn * itemsize))
    ta = B if B <= rows_fit else max(_SUBLANE, (rows_fit // _SUBLANE) * _SUBLANE)
    return ta, tn


def _forward_flat(x2d, z2d, B, C, itemsize):
    dtype = x2d.dtype
    two_c = 2 * C
    n = two_c * C                       # flattened output row length
    n_pad = _round_up(n, _LANE)         # lane-dense slab width (full-width vst)

    # Flattened z row, zero-padded to the lane-dense width.
    z_flat = z2d.reshape(1, n)
    if n_pad > n:
        z_flat = jnp.pad(z_flat, ((0, 0), (0, n_pad - n)))

    # 0/1 expansion matrix E[b, j] = 1 iff j // (2C) == b  (padding columns = 0).
    owner = (jnp.arange(n_pad, dtype=jnp.int32) // two_c)[None, :]            # (1, Npad)
    e_mat = (owner == jnp.arange(C, dtype=jnp.int32)[:, None]).astype(dtype)  # (C, Npad)

    budget = _block_budget_bytes()
    ta, tn = _pick_flat_tiles(B, n_pad, itemsize, budget)
    grid = (pl.cdiv(B, ta), pl.cdiv(n_pad, tn))
    block_bytes = itemsize * (ta * tn + ta * C + tn + C * tn)

    out2d = pl.pallas_call(
        _flat_kernel,
        out_shape=jax.ShapeDtypeStruct((B, n_pad), dtype),
        grid=grid,
        in_specs=[
            pl.BlockSpec((ta, C), lambda i, j: (i, 0)),    # x rows (row-tiled)
            pl.BlockSpec((1, tn), lambda i, j: (0, j)),    # z row (column-tiled)
            pl.BlockSpec((C, tn), lambda i, j: (0, j)),    # expansion matrix
        ],
        out_specs=pl.BlockSpec((ta, tn), lambda i, j: (i, j)),
        compiler_params=pltpu.CompilerParams(
            dimension_semantics=("parallel", "parallel"),
            vmem_limit_bytes=_vmem_limit(block_bytes),
        ),
    )(x2d, z_flat, e_mat)

    # Contiguous slice + reshape of the lane-dense slab (fused under jit; cheap).
    return out2d[:, :n].reshape(B, C, two_c)


# ----------------------------------------------------------------------------
# Path B: 2*C >= 128 — natural 3-D blocks, plain broadcasting, no expansion
# ----------------------------------------------------------------------------
def _bcast_kernel(x_ref, z_ref, o_ref):
    # x_ref : (TA, TC, 1), z_ref : (1, TC, 2C), o_ref : (TA, TC, 2C)
    v = jnp.sin(x_ref[...]) + z_ref[...]
    o_ref[...] = (0.5 * jnp.tanh(0.5 * v) + 0.5).astype(o_ref.dtype)


def _forward_bcast(x3d, z2d, B, C, itemsize):
    dtype = x3d.dtype
    two_c = 2 * C
    z3d = z2d.reshape(1, C, two_c)      # out[a,b,c] = sigmoid(z[b,c] + sin(x[a,b,0]))

    budget = _block_budget_bytes()
    row_bytes = two_c * itemsize
    tc = max(_SUBLANE,
             ((budget // (_SUBLANE * row_bytes)) // _SUBLANE) * _SUBLANE)
    tc = C if tc >= C else tc
    rows_fit = max(1, budget // (tc * row_bytes))
    ta = B if B <= rows_fit else rows_fit

    grid = (pl.cdiv(B, ta), pl.cdiv(C, tc))
    block_bytes = itemsize * (ta * tc * two_c + ta * tc + tc * two_c)

    return pl.pallas_call(
        _bcast_kernel,
        out_shape=jax.ShapeDtypeStruct((B, C, two_c), dtype),
        grid=grid,
        in_specs=[
            pl.BlockSpec((ta, tc, 1), lambda i, j: (i, j, 0)),
            pl.BlockSpec((1, tc, two_c), lambda i, j: (0, j, 0)),
        ],
        out_specs=pl.BlockSpec((ta, tc, two_c), lambda i, j: (i, j, 0)),
        compiler_params=pltpu.CompilerParams(
            dimension_semantics=("parallel", "parallel"),
            vmem_limit_bytes=_vmem_limit(block_bytes),
        ),
    )(x3d, z3d)


# ----------------------------------------------------------------------------
# Wrapper
# ----------------------------------------------------------------------------
@jax.jit
def model_forward(x):
    """x: (B, C, 1) float32 with B == C.  Returns (B, C, 2C) float32."""
    B, C, W = x.shape
    assert W == 1 and B == C, "broadcast-valid configuration (see header note)"
    itemsize = jnp.dtype(x.dtype).itemsize

    x2d = x.reshape(B, C)
    z2d = jnp.concatenate([x2d, x2d], axis=1)     # (B, 2C): z[b, c] = x2d[b, c % C]

    if 2 * C >= _LANE:
        return _forward_bcast(x, z2d, B, C, itemsize)
    return _forward_flat(x2d, z2d, B, C, itemsize)


def _reference(x):
    B = x.shape[0]
    z = jnp.concatenate([x, x], axis=1).reshape(B, -1)   # (B, 2C)
    return jax.nn.sigmoid(z + jnp.sin(x))                # broadcast -> (B, C, 2C)


if __name__ == "__main__":
    key = jax.random.PRNGKey(0)
    B = C = 8  # small, broadcast-valid shape (W = 1); flattened slab = 128 lanes
    x = jax.random.normal(key, (B, C, 1), dtype=jnp.float32)

    out = jax.block_until_ready(model_forward(x))

    ref = _reference(x)
    np.testing.assert_allclose(np.asarray(out), np.asarray(ref),
                               rtol=1e-5, atol=1e-5)
    print("KERNEL_OK")
</pallas_src>

<mosaic_0001>
module attributes {stable_mosaic.version = 11 : i64} {
  func.func @_flat_kernel(%arg0: i32, %arg1: i32, %arg2: memref<8x8xf32, #tpu.memory_space<vmem>>, %arg3: memref<1x128xf32, #tpu.memory_space<vmem>>, %arg4: memref<8x128xf32, #tpu.memory_space<vmem>>, %arg5: memref<8x128xf32, #tpu.memory_space<vmem>>) attributes {dimension_semantics = [#tpu.dimension_semantics<parallel>, #tpu.dimension_semantics<parallel>], iteration_bounds = array<i64: 1, 1>, scalar_prefetch = 0 : i64, scratch_operands = 0 : i64, tpu.core_type = #tpu.core_type<tc>, window_params = [{transform_indices = @transform_0, window_bounds = array<i64: 8, 8>}, {transform_indices = @transform_1, window_bounds = array<i64: 1, 128>}, {transform_indices = @transform_2, window_bounds = array<i64: 8, 128>}, {transform_indices = @transform_3, window_bounds = array<i64: 8, 128>}]} {
    %c0 = arith.constant 0 : index
    %c0_0 = arith.constant 0 : index
    %0 = vector.load %arg2[%c0, %c0_0] : memref<8x8xf32, #tpu.memory_space<vmem>>, vector<8x8xf32>
    %1 = math.sin %0 : vector<8x8xf32>
    %c0_1 = arith.constant 0 : index
    %c0_2 = arith.constant 0 : index
    %2 = vector.load %arg4[%c0_1, %c0_2] : memref<8x128xf32, #tpu.memory_space<vmem>>, vector<8x128xf32>
    %cst = arith.constant dense<0.000000e+00> : vector<8x128xf32>
    %3 = tpu.matmul %1, %2, %cst {dimension_numbers = #tpu.dot_dimension_numbers<[1], [0], [0], [1], [0, 0, 1, 1], [], []>, precision = #tpu.contract_precision<fp32>} : vector<8x8xf32>, vector<8x128xf32>, vector<8x128xf32> -> vector<8x128xf32>
    %c0_3 = arith.constant 0 : index
    %c0_4 = arith.constant 0 : index
    %4 = vector.load %arg3[%c0_3, %c0_4] : memref<1x128xf32, #tpu.memory_space<vmem>>, vector<1x128xf32>
    %5 = vector.broadcast %4 : vector<1x128xf32> to vector<8x128xf32>
    %6 = arith.addf %3, %5 : vector<8x128xf32>
    %cst_5 = arith.constant 5.000000e-01 : f32
    %7 = vector.broadcast %cst_5 : f32 to vector<8x128xf32>
    %8 = arith.mulf %7, %6 : vector<8x128xf32>
    %9 = math.tanh %8 : vector<8x128xf32>
    %cst_6 = arith.constant 5.000000e-01 : f32
    %10 = vector.broadcast %cst_6 : f32 to vector<8x128xf32>
    %11 = arith.mulf %10, %9 : vector<8x128xf32>
    %cst_7 = arith.constant 5.000000e-01 : f32
    %12 = vector.broadcast %cst_7 : f32 to vector<8x128xf32>
    %13 = arith.addf %11, %12 : vector<8x128xf32>
    %c0_8 = arith.constant 0 : index
    %c0_9 = arith.constant 0 : index
    %14 = vector.load %arg5[%c0_8, %c0_9] : memref<8x128xf32, #tpu.memory_space<vmem>>, vector<8x128xf32>
    tpu.vector_store %arg5[%c0_8, %c0_9], %13 {strides = array<i32>} : memref<8x128xf32, #tpu.memory_space<vmem>>, vector<8x128xf32>,
    return
  }
  func.func @transform_0(%arg0: i32, %arg1: i32) -> (i32, i32) {
    %c0_i32 = arith.constant 0 : i32
    %c0_i32_0 = arith.constant 0 : i32
    return %arg0, %c0_i32 : i32, i32
  }
  func.func @transform_1(%arg0: i32, %arg1: i32) -> (i32, i32) {
    %c0_i32 = arith.constant 0 : i32
    %c0_i32_0 = arith.constant 0 : i32
    return %c0_i32, %arg1 : i32, i32
  }
  func.func @transform_2(%arg0: i32, %arg1: i32) -> (i32, i32) {
    %c0_i32 = arith.constant 0 : i32
    %c0_i32_0 = arith.constant 0 : i32
    return %c0_i32, %arg1 : i32, i32
  }
  func.func @transform_3(%arg0: i32, %arg1: i32) -> (i32, i32) {
    %c0_i32 = arith.constant 0 : i32
    return %arg0, %arg1 : i32, i32
  }
}

</mosaic_0001>

<llo_original>
// kernel: model_forward.1
$region0: #{model_forward.1}
  #allocation0 [shape = 'u32[]', space=smem, size = 0x4, offset = 0x4, fixed_abs, tag = 'smem constant byte address 0x4 - core index']
  #allocation1 [shape = 'u32[144,128]{1,0:T(1,128)}', space=vmem, size = 0x12000, scoped, tag = 'internal scratch']
  %s0 = inlined_call_operand.vmem [shape: f32[8,8], index: 0, kind: input, shape index: {}]
  %s1 = inlined_call_operand.vmem [shape: f32[1,128], index: 1, kind: input, shape index: {}]
  %s2 = inlined_call_operand.vmem [shape: f32[8,128], index: 2, kind: input, shape index: {}]
  %s3 = inlined_call_operand.vmem [shape: f32[8,128], index: 3, kind: output, shape index: {}]
  %s4 = sld [smem:[#allocation0]]
  $region22: #{model_forward.1} parent=0
    _
  %s6 = ssub.s32 1, %s4
  %s7 = scalar_select 0, %s6, %s4
  // Predicated region
  $region2: #{model_forward.1} parent=0 // pred_check
    _
  $region3: #{model_forward.1} parent=0 // pred_check_branch
    %9 = sbr.rel (0) target = $region5
  $region4: #{model_forward.1} parent=0 // pred_region
    _
  $region5: #{model_forward.1} parent=0 // pred_fallthru
    _
  // Predicated region
  $region6: #{model_forward.1} parent=0 // pred_check
    _
  $region7: #{model_forward.1} parent=0 // pred_check_branch
    %11 = sbr.rel (0) target = $region9
  $region8: #{model_forward.1} parent=0 // pred_region
    _
  $region9: #{model_forward.1} parent=0 // pred_fallthru
    _
  // Predicated region
  $region10: #{model_forward.1} parent=0 // pred_check
    _
  $region11: #{model_forward.1} parent=0 // pred_check_branch
    %13 = sbr.rel (0) target = $region13
  $region12: #{model_forward.1} parent=0 // pred_region
    _
  $region13: #{model_forward.1} parent=0 // pred_fallthru
    _
  %v14 = vld [vmem:[%s0] sm:$0xff]
  %v15 = vand.u32 2147483647, %v14
  %vm16 = vcmp.le.f32.partialorder %v15, 0.7853982
  %vm17 = vcmp.lt.s32.totalorder %v14, 0
  %v18 = vand.u32 %v14, 2139095040
  %v19 = vshrl.u32 %v18, 23
  %v20 = vsub.s32 %v19, 127
  %v21 = vand.u32 2147483647, %v14
  %v22 = vand.u32 %v21, 8388607
  %v23 = vor.u32 %v22, 8388608
  %v24 = vsub.s32 0, %v23
  %v25 = vadd.s32 %v20, 1
  %vm26 = vcmp.gt.s32.totalorder %v25, 0
  %v27 = vsel %vm26, %v25, 0
  %v28 = vshrl.u32 %v27, 5
  %v29 = vand.u32 %v27, 31
  %v30 = vsub.s32 32, %v29
  %v31 = vshrl.u32 683565275, %v30
  %v32 = vshll.u32 683565275, %v29
  %v33 = vshrl.u32 2475754826, %v30
  %v34 = vor.u32 %v32, %v33
  %v35 = vshll.u32 2475754826, %v29
  %v36 = vshrl.u32 2131351028, %v30
  %v37 = vor.u32 %v35, %v36
  %v38 = vshll.u32 2131351028, %v29
  %v39 = vshrl.u32 2102212464, %v30
  %v40 = vor.u32 %v38, %v39
  %v41 = vshll.u32 2102212464, %v29
  %v42 = vshrl.u32 920167782, %v30
  %v43 = vor.u32 %v41, %v42
  %v44 = vshll.u32 920167782, %v29
  %v45 = vshrl.u32 1326507024, %v30
  %v46 = vor.u32 %v44, %v45
  %vm47 = vcmp.lt.s32.totalorder %v28, 1
  %vm48 = vcmp.lt.s32.totalorder %v28, 2
  %vm49 = vcmp.lt.s32.totalorder %v28, 3
  %vm50 = vcmp.lt.s32.totalorder %v28, 4
  %v51 = vsel %vm47, %v31, %v34
  %v52 = vsel %vm50, %v40, 2102212464
  %v53 = vsel %vm49, %v37, %v52
  %v54 = vsel %vm48, %v51, %v53
  %v55 = vsel %vm47, %v34, %v37
  %v56 = vsel %vm50, %v43, 920167782
  %v57 = vsel %vm49, %v40, %v56
  %v58 = vsel %vm48, %v55, %v57
  %v59 = vsel %vm47, %v37, %v40
  %v60 = vsel %vm50, %v46, 1326507024
  %v61 = vsel %vm49, %v43, %v60
  %v62 = vsel %vm48, %v59, %v61
  %v63 = vshll.u32 %v23, 8
  %v64 = vmul.u32.u64.compose %v63, %v62
  %v65 = vextract.low.u32 %v64
  %v66 = vextract.high.u32 %v64
  %v67 = vmul.u32.u64.compose %v63, %v58
  %v68 = vextract.low.u32 %v67
  %v69 = vextract.high.u32 %v67
  %v70 = vmul.u32 %v63, %v54
  %v71 = vadd.s32 %v66, %v68
  %vm72 = vc.u32 %v66, %v68
  %v73 = vadd.s32 %v69, 1
  %v74 = vsel %vm72, %v73, %v69
  %v75 = vadd.s32 %v70, %v74
  %v76 = vadd.s32 %v75, 536870912
  %v77 = vshrl.u32 %v76, 30
  %v78 = vshll.u32 %v77, 30
  %v79 = vsub.s32 %v75, %v78
  %vm80 = vcmp.lt.s32.totalorder %v79, 0
  %v81 = vsub.s32 0, %v79
  %v82 = vsel %vm80, %v81, %v79
  %v83 = vclz %v82
  %v84 = vsub.s32 %v83, 2
  %vm85 = vcmp.gt.s32.totalorder 0, %v84
  %v86 = vsel %vm85, 0, %v84
  %v87 = vsub.s32 32, %v86
  %v88 = vshll.u32 %v79, %v86
  %v89 = vshrl.u32 %v71, %v87
  %v90 = vor.u32 %v88, %v89
  %v91 = vsub.s32 4294967266, %v86
  %v92 = vadd.s32 %v91, 127
  %v93 = vshll.u32 %v92, 23
  %v94 = vor.u32 4788187, %v93
  %v95 = vand.u32 2147483647, %v94
  %v97 = vcvt.s32.f32 %v90
  %v98 = vmul.f32 %v97, %v95
  %v99 = vxor.u32 %v98, 2147483648
  %v100 = vsel %vm17, %v99, %v98
  %v101 = vsub.s32 4, %v77
  %v102 = vsel %vm17, %v101, %v77
  %v103 = vsel %vm16, %v14, %v100
  %v104 = vsel %vm16, 0, %v102
  %v105 = vcosq.f32.pop %v103
  %v106 = vsinq.f32.pop %v103
  %vm107 = vweird.f32 %v14
  %v108 = vadd.s32 %v104, 3
  %v109 = vand.u32 %v108, 3
  %vm110 = vcmp.lt.s32.totalorder %v109, 2
  %vm111 = vcmp.eq.s32.totalorder %v109, 0
  %v112 = vxor.u32 %v106, 2147483648
  %v113 = vsel %vm111, %v105, %v112
  %vm114 = vcmp.eq.s32.totalorder %v109, 2
  %v115 = vxor.u32 %v105, 2147483648
  %v116 = vsel %vm114, %v115, %v106
  %v117 = vsel %vm110, %v113, %v116
  %v118 = vsel %vm107, nan, %v117
  %v119 = vld [vmem:[%s2] sm:$0xff]
  %v120 = vld [vmem:[%s1] sm:$0x1]
  %v122 = vlaneseq
  %v123 = vshrl.u32 %v122, 7
  %v124 = vsub.s32 0, %v123
  %v125 = vrot.slane %v120, %v124
  %vm127 = vcmask 64512
  %v129 = vsel %vm127, %v118, 0
  %131 = vmatprep.subr.mxu0 0.0
  %132 = vmatpush1.msra.mxu0 0.0
  %133 = vmatprep.subr.mxu0 0.0
  %134 = vmatpush1.msra.mxu0 0.0
  %135 = vmatprep.subr.mxu0 0.0
  %136 = vmatpush1.msra.mxu0 0.0
  %137 = vmatprep.subr.mxu0 0.0
  %138 = vmatpush1.msra.mxu0 0.0
  %139 = vmatprep.subr.mxu0 0.0
  %140 = vmatpush1.msra.mxu0 0.0
  %141 = vmatprep.subr.mxu0 0.0
  %142 = vmatpush1.msra.mxu0 0.0
  %143 = vmatprep.subr.mxu0 0.0
  %144 = vmatpush1.msra.mxu0 0.0
  %145 = vmatprep.subr.mxu0 0.0
  %146 = vmatpush1.msra.mxu0 0.0
  %147 = vmatprep.subr.mxu0 0.0
  %148 = vmatpush1.msra.mxu0 0.0
  %149 = vmatprep.subr.mxu0 0.0
  %150 = vmatpush1.msra.mxu0 0.0
  %151 = vmatprep.subr.mxu0 0.0
  %152 = vmatpush1.msra.mxu0 0.0
  %153 = vmatprep.subr.mxu0 0.0
  %154 = vmatpush1.msra.mxu0 0.0
  %155 = vmatprep.subr.mxu0 0.0
  %156 = vmatpush1.msra.mxu0 0.0
  %157 = vmatprep.subr.mxu0 0.0
  %158 = vmatpush1.msra.mxu0 0.0
  %159 = vmatprep.subr.mxu0 0.0
  %160 = vmatpush1.msra.mxu0 0.0
  %161 = vmatprep.subr.mxu0 0.0
  %v162 = vand.u32 %v119, 4294901760
  %163 = vmatpush1.msra.mxu0 %v162
  %164 = vmatprep.subr.mxu0 0.0
  %165 = vmatpush2.msra.mxu0 0.0
  %166 = vmatprep.subr.mxu0 0.0
  %167 = vmatpush2.msra.mxu0 0.0
  %168 = vmatprep.subr.mxu0 0.0
  %169 = vmatpush2.msra.mxu0 0.0
  %170 = vmatprep.subr.mxu0 0.0
  %171 = vmatpush2.msra.mxu0 0.0
  %172 = vmatprep.subr.mxu0 0.0
  %173 = vmatpush2.msra.mxu0 0.0
  %174 = vmatprep.subr.mxu0 0.0
  %175 = vmatpush2.msra.mxu0 0.0
  %176 = vmatprep.subr.mxu0 0.0
  %177 = vmatpush2.msra.mxu0 0.0
  %178 = vmatprep.subr.mxu0 0.0
  %179 = vmatpush2.msra.mxu0 0.0
  %180 = vmatprep.subr.mxu0 0.0
  %181 = vmatpush2.msra.mxu0 0.0
  %182 = vmatprep.subr.mxu0 0.0
  %183 = vmatpush2.msra.mxu0 0.0
  %184 = vmatprep.subr.mxu0 0.0
  %185 = vmatpush2.msra.mxu0 0.0
  %186 = vmatprep.subr.mxu0 0.0
  %187 = vmatpush2.msra.mxu0 0.0
  %188 = vmatprep.subr.mxu0 0.0
  %189 = vmatpush2.msra.mxu0 0.0
  %190 = vmatprep.subr.mxu0 0.0
  %191 = vmatpush2.msra.mxu0 0.0
  %192 = vmatprep.subr.mxu0 0.0
  %193 = vmatpush2.msra.mxu0 0.0
  %194 = vmatprep.subr.mxu0 0.0
  %195 = vmatpush2.msra.mxu0 0.0
  %196 = vmatprep.mubr.f32.mxu0 0.0
  %v197 = vand.u32 %v129, 4294901760
  %v198 = vsub.f32 %v129, %v197
  %v199 = vand.u32 %v198, 4294901760
  %v200 = vsub.f32 %v198, %v199
  %v201 = vand.u32 %v200, 4294901760
  %202 = vmatmul.mubr.f32.gmra.mxu0 %v201
  %v203 = vpop.f32.mrf.mxu0
  %v204 = vadd.f32 %v125, %v203
  %v205 = vpop.f32.mrf.mxu0
  %206 = vdwg.mxu0
  %207 = vmatprep.subr.mxu0 0.0
  %208 = vmatpush1.msra.mxu0 0.0
  %209 = vmatprep.subr.mxu0 0.0
  %210 = vmatpush1.msra.mxu0 0.0
  %211 = vmatprep.subr.mxu0 0.0
  %212 = vmatpush1.msra.mxu0 0.0
  %213 = vmatprep.subr.mxu0 0.0
  %214 = vmatpush1.msra.mxu0 0.0
  %215 = vmatprep.subr.mxu0 0.0
  %216 = vmatpush1.msra.mxu0 0.0
  %217 = vmatprep.subr.mxu0 0.0
  %218 = vmatpush1.msra.mxu0 0.0
  %219 = vmatprep.subr.mxu0 0.0
  %220 = vmatpush1.msra.mxu0 0.0
  %221 = vmatprep.subr.mxu0 0.0
  %222 = vmatpush1.msra.mxu0 0.0
  %223 = vmatprep.subr.mxu0 0.0
  %224 = vmatpush1.msra.mxu0 0.0
  %225 = vmatprep.subr.mxu0 0.0
  %226 = vmatpush1.msra.mxu0 0.0
  %227 = vmatprep.subr.mxu0 0.0
  %228 = vmatpush1.msra.mxu0 0.0
  %229 = vmatprep.subr.mxu0 0.0
  %230 = vmatpush1.msra.mxu0 0.0
  %231 = vmatprep.subr.mxu0 0.0
  %232 = vmatpush1.msra.mxu0 0.0
  %233 = vmatprep.subr.mxu0 0.0
  %234 = vmatpush1.msra.mxu0 0.0
  %235 = vmatprep.subr.mxu0 0.0
  %236 = vmatpush1.msra.mxu0 0.0
  %237 = vmatprep.subr.mxu0 0.0
  %v238 = vand.u32 %v119, 4294901760
  %v239 = vsub.f32 %v119, %v238
  %v240 = vand.u32 %v239, 4294901760
  %v241 = vsub.f32 %v239, %v240
  %v242 = vand.u32 %v241, 4294901760
  %243 = vmatpush1.msra.mxu0 %v242
  %244 = vmatprep.subr.mxu0 0.0
  %245 = vmatpush2.msra.mxu0 0.0
  %246 = vmatprep.subr.mxu0 0.0
  %247 = vmatpush2.msra.mxu0 0.0
  %248 = vmatprep.subr.mxu0 0.0
  %249 = vmatpush2.msra.mxu0 0.0
  %250 = vmatprep.subr.mxu0 0.0
  %251 = vmatpush2.msra.mxu0 0.0
  %252 = vmatprep.subr.mxu0 0.0
  %253 = vmatpush2.msra.mxu0 0.0
  %254 = vmatprep.subr.mxu0 0.0
  %255 = vmatpush2.msra.mxu0 0.0
  %256 = vmatprep.subr.mxu0 0.0
  %257 = vmatpush2.msra.mxu0 0.0
  %258 = vmatprep.subr.mxu0 0.0
  %259 = vmatpush2.msra.mxu0 0.0
  %260 = vmatprep.subr.mxu0 0.0
  %261 = vmatpush2.msra.mxu0 0.0
  %262 = vmatprep.subr.mxu0 0.0
  %263 = vmatpush2.msra.mxu0 0.0
  %264 = vmatprep.subr.mxu0 0.0
  %265 = vmatpush2.msra.mxu0 0.0
  %266 = vmatprep.subr.mxu0 0.0
  %267 = vmatpush2.msra.mxu0 0.0
  %268 = vmatprep.subr.mxu0 0.0
  %269 = vmatpush2.msra.mxu0 0.0
  %270 = vmatprep.subr.mxu0 0.0
  %271 = vmatpush2.msra.mxu0 0.0
  %272 = vmatprep.subr.mxu0 0.0
  %273 = vmatpush2.msra.mxu0 0.0
  %274 = vmatprep.subr.mxu0 0.0
  %275 = vmatpush2.msra.mxu0 0.0
  %276 = vmatprep.mubr.f32.mxu0 0.0
  %v277 = vand.u32 %v129, 4294901760
  %278 = vmatmul.mubr.f32.gmra.mxu0 %v277
  %v279 = vpop.f32.mrf.mxu0
  %v280 = vadd.f32 %v204, %v279
  %v281 = vpop.f32.mrf.mxu0
  %282 = vdwg.mxu0
  %283 = vmatprep.subr.mxu0 0.0
  %284 = vmatpush1.msra.mxu0 0.0
  %285 = vmatprep.subr.mxu0 0.0
  %286 = vmatpush1.msra.mxu0 0.0
  %287 = vmatprep.subr.mxu0 0.0
  %288 = vmatpush1.msra.mxu0 0.0
  %289 = vmatprep.subr.mxu0 0.0
  %290 = vmatpush1.msra.mxu0 0.0
  %291 = vmatprep.subr.mxu0 0.0
  %292 = vmatpush1.msra.mxu0 0.0
  %293 = vmatprep.subr.mxu0 0.0
  %294 = vmatpush1.msra.mxu0 0.0
  %295 = vmatprep.subr.mxu0 0.0
  %296 = vmatpush1.msra.mxu0 0.0
  %297 = vmatprep.subr.mxu0 0.0
  %298 = vmatpush1.msra.mxu0 0.0
  %299 = vmatprep.subr.mxu0 0.0
  %300 = vmatpush1.msra.mxu0 0.0
  %301 = vmatprep.subr.mxu0 0.0
  %302 = vmatpush1.msra.mxu0 0.0
  %303 = vmatprep.subr.mxu0 0.0
  %304 = vmatpush1.msra.mxu0 0.0
  %305 = vmatprep.subr.mxu0 0.0
  %306 = vmatpush1.msra.mxu0 0.0
  %307 = vmatprep.subr.mxu0 0.0
  %308 = vmatpush1.msra.mxu0 0.0
  %309 = vmatprep.subr.mxu0 0.0
  %310 = vmatpush1.msra.mxu0 0.0
  %311 = vmatprep.subr.mxu0 0.0
  %312 = vmatpush1.msra.mxu0 0.0
  %313 = vmatprep.subr.mxu0 0.0
  %v314 = vand.u32 %v119, 4294901760
  %v315 = vsub.f32 %v119, %v314
  %316 = vmatpush1.msra.mxu0 %v315
  %317 = vmatprep.subr.mxu0 0.0
  %318 = vmatpush2.msra.mxu0 0.0
  %319 = vmatprep.subr.mxu0 0.0
  %320 = vmatpush2.msra.mxu0 0.0
  %321 = vmatprep.subr.mxu0 0.0
  %322 = vmatpush2.msra.mxu0 0.0
  %323 = vmatprep.subr.mxu0 0.0
  %324 = vmatpush2.msra.mxu0 0.0
  %325 = vmatprep.subr.mxu0 0.0
  %326 = vmatpush2.msra.mxu0 0.0
  %327 = vmatprep.subr.mxu0 0.0
  %328 = vmatpush2.msra.mxu0 0.0
  %329 = vmatprep.subr.mxu0 0.0
  %330 = vmatpush2.msra.mxu0 0.0
  %331 = vmatprep.subr.mxu0 0.0
  %332 = vmatpush2.msra.mxu0 0.0
  %333 = vmatprep.subr.mxu0 0.0
  %334 = vmatpush2.msra.mxu0 0.0
  %335 = vmatprep.subr.mxu0 0.0
  %336 = vmatpush2.msra.mxu0 0.0
  %337 = vmatprep.subr.mxu0 0.0
  %338 = vmatpush2.msra.mxu0 0.0
  %339 = vmatprep.subr.mxu0 0.0
  %340 = vmatpush2.msra.mxu0 0.0
  %341 = vmatprep.subr.mxu0 0.0
  %342 = vmatpush2.msra.mxu0 0.0
  %343 = vmatprep.subr.mxu0 0.0
  %344 = vmatpush2.msra.mxu0 0.0
  %345 = vmatprep.subr.mxu0 0.0
  %346 = vmatpush2.msra.mxu0 0.0
  %347 = vmatprep.subr.mxu0 0.0
  %348 = vmatpush2.msra.mxu0 0.0
  %349 = vmatprep.mubr.f32.mxu0 0.0
  %v350 = vand.u32 %v129, 4294901760
  %v351 = vsub.f32 %v129, %v350
  %352 = vmatmul.mubr.f32.gmra.mxu0 %v351
  %v353 = vpop.f32.mrf.mxu0
  %v354 = vadd.f32 %v280, %v353
  %v355 = vpop.f32.mrf.mxu0
  %356 = vdwg.mxu0
  %357 = vmatprep.subr.mxu0 0.0
  %358 = vmatpush1.msra.mxu0 0.0
  %359 = vmatprep.subr.mxu0 0.0
  %360 = vmatpush1.msra.mxu0 0.0
  %361 = vmatprep.subr.mxu0 0.0
  %362 = vmatpush1.msra.mxu0 0.0
  %363 = vmatprep.subr.mxu0 0.0
  %364 = vmatpush1.msra.mxu0 0.0
  %365 = vmatprep.subr.mxu0 0.0
  %366 = vmatpush1.msra.mxu0 0.0
  %367 = vmatprep.subr.mxu0 0.0
  %368 = vmatpush1.msra.mxu0 0.0
  %369 = vmatprep.subr.mxu0 0.0
  %370 = vmatpush1.msra.mxu0 0.0
  %371 = vmatprep.subr.mxu0 0.0
  %372 = vmatpush1.msra.mxu0 0.0
  %373 = vmatprep.subr.mxu0 0.0
  %374 = vmatpush1.msra.mxu0 0.0
  %375 = vmatprep.subr.mxu0 0.0
  %376 = vmatpush1.msra.mxu0 0.0
  %377 = vmatprep.subr.mxu0 0.0
  %378 = vmatpush1.msra.mxu0 0.0
  %379 = vmatprep.subr.mxu0 0.0
  %380 = vmatpush1.msra.mxu0 0.0
  %381 = vmatprep.subr.mxu0 0.0
  %382 = vmatpush1.msra.mxu0 0.0
  %383 = vmatprep.subr.mxu0 0.0
  %384 = vmatpush1.msra.mxu0 0.0
  %385 = vmatprep.subr.mxu0 0.0
  %386 = vmatpush1.msra.mxu0 0.0
  %387 = vmatprep.subr.mxu0 0.0
  %v388 = vand.u32 %v119, 4294901760
  %389 = vmatpush1.msra.mxu0 %v388
  %390 = vmatprep.subr.mxu0 0.0
  %391 = vmatpush2.msra.mxu0 0.0
  %392 = vmatprep.subr.mxu0 0.0
  %393 = vmatpush2.msra.mxu0 0.0
  %394 = vmatprep.subr.mxu0 0.0
  %395 = vmatpush2.msra.mxu0 0.0
  %396 = vmatprep.subr.mxu0 0.0
  %397 = vmatpush2.msra.mxu0 0.0
  %398 = vmatprep.subr.mxu0 0.0
  %399 = vmatpush2.msra.mxu0 0.0
  %400 = vmatprep.subr.mxu0 0.0
  %401 = vmatpush2.msra.mxu0 0.0
  %402 = vmatprep.subr.mxu0 0.0
  %403 = vmatpush2.msra.mxu0 0.0
  %404 = vmatprep.subr.mxu0 0.0
  %405 = vmatpush2.msra.mxu0 0.0
  %406 = vmatprep.subr.mxu0 0.0
  %407 = vmatpush2.msra.mxu0 0.0
  %408 = vmatprep.subr.mxu0 0.0
  %409 = vmatpush2.msra.mxu0 0.0
  %410 = vmatprep.subr.mxu0 0.0
  %411 = vmatpush2.msra.mxu0 0.0
  %412 = vmatprep.subr.mxu0 0.0
  %413 = vmatpush2.msra.mxu0 0.0
  %414 = vmatprep.subr.mxu0 0.0
  %415 = vmatpush2.msra.mxu0 0.0
  %416 = vmatprep.subr.mxu0 0.0
  %417 = vmatpush2.msra.mxu0 0.0
  %418 = vmatprep.subr.mxu0 0.0
  %419 = vmatpush2.msra.mxu0 0.0
  %420 = vmatprep.subr.mxu0 0.0
  %421 = vmatpush2.msra.mxu0 0.0
  %422 = vmatprep.mubr.f32.mxu0 0.0
  %v423 = vand.u32 %v129, 4294901760
  %v424 = vsub.f32 %v129, %v423
  %v425 = vand.u32 %v424, 4294901760
  %426 = vmatmul.mubr.f32.gmra.mxu0 %v425
  %v427 = vpop.f32.mrf.mxu0
  %v428 = vadd.f32 %v354, %v427
  %v429 = vpop.f32.mrf.mxu0
  %430 = vdwg.mxu0
  %431 = vmatprep.subr.mxu0 0.0
  %432 = vmatpush1.msra.mxu0 0.0
  %433 = vmatprep.subr.mxu0 0.0
  %434 = vmatpush1.msra.mxu0 0.0
  %435 = vmatprep.subr.mxu0 0.0
  %436 = vmatpush1.msra.mxu0 0.0
  %437 = vmatprep.subr.mxu0 0.0
  %438 = vmatpush1.msra.mxu0 0.0
  %439 = vmatprep.subr.mxu0 0.0
  %440 = vmatpush1.msra.mxu0 0.0
  %441 = vmatprep.subr.mxu0 0.0
  %442 = vmatpush1.msra.mxu0 0.0
  %443 = vmatprep.subr.mxu0 0.0
  %444 = vmatpush1.msra.mxu0 0.0
  %445 = vmatprep.subr.mxu0 0.0
  %446 = vmatpush1.msra.mxu0 0.0
  %447 = vmatprep.subr.mxu0 0.0
  %448 = vmatpush1.msra.mxu0 0.0
  %449 = vmatprep.subr.mxu0 0.0
  %450 = vmatpush1.msra.mxu0 0.0
  %451 = vmatprep.subr.mxu0 0.0
  %452 = vmatpush1.msra.mxu0 0.0
  %453 = vmatprep.subr.mxu0 0.0
  %454 = vmatpush1.msra.mxu0 0.0
  %455 = vmatprep.subr.mxu0 0.0
  %456 = vmatpush1.msra.mxu0 0.0
  %457 = vmatprep.subr.mxu0 0.0
  %458 = vmatpush1.msra.mxu0 0.0
  %459 = vmatprep.subr.mxu0 0.0
  %460 = vmatpush1.msra.mxu0 0.0
  %461 = vmatprep.subr.mxu0 0.0
  %v462 = vand.u32 %v119, 4294901760
  %v463 = vsub.f32 %v119, %v462
  %v464 = vand.u32 %v463, 4294901760
  %465 = vmatpush1.msra.mxu0 %v464
  %466 = vmatprep.subr.mxu0 0.0
  %467 = vmatpush2.msra.mxu0 0.0
  %468 = vmatprep.subr.mxu0 0.0
  %469 = vmatpush2.msra.mxu0 0.0
  %470 = vmatprep.subr.mxu0 0.0
  %471 = vmatpush2.msra.mxu0 0.0
  %472 = vmatprep.subr.mxu0 0.0
  %473 = vmatpush2.msra.mxu0 0.0
  %474 = vmatprep.subr.mxu0 0.0
  %475 = vmatpush2.msra.mxu0 0.0
  %476 = vmatprep.subr.mxu0 0.0
  %477 = vmatpush2.msra.mxu0 0.0
  %478 = vmatprep.subr.mxu0 0.0
  %479 = vmatpush2.msra.mxu0 0.0
  %480 = vmatprep.subr.mxu0 0.0
  %481 = vmatpush2.msra.mxu0 0.0
  %482 = vmatprep.subr.mxu0 0.0
  %483 = vmatpush2.msra.mxu0 0.0
  %484 = vmatprep.subr.mxu0 0.0
  %485 = vmatpush2.msra.mxu0 0.0
  %486 = vmatprep.subr.mxu0 0.0
  %487 = vmatpush2.msra.mxu0 0.0
  %488 = vmatprep.subr.mxu0 0.0
  %489 = vmatpush2.msra.mxu0 0.0
  %490 = vmatprep.subr.mxu0 0.0
  %491 = vmatpush2.msra.mxu0 0.0
  %492 = vmatprep.subr.mxu0 0.0
  %493 = vmatpush2.msra.mxu0 0.0
  %494 = vmatprep.subr.mxu0 0.0
  %495 = vmatpush2.msra.mxu0 0.0
  %496 = vmatprep.subr.mxu0 0.0
  %497 = vmatpush2.msra.mxu0 0.0
  %498 = vmatprep.mubr.f32.mxu0 0.0
  %v499 = vand.u32 %v129, 4294901760
  %500 = vmatmul.mubr.f32.gmra.mxu0 %v499
  %v501 = vpop.f32.mrf.mxu0
  %v502 = vadd.f32 %v428, %v501
  %v503 = vpop.f32.mrf.mxu0
  %504 = vdwg.mxu0
  %505 = vmatprep.subr.mxu0 0.0
  %506 = vmatpush1.msra.mxu0 0.0
  %507 = vmatprep.subr.mxu0 0.0
  %508 = vmatpush1.msra.mxu0 0.0
  %509 = vmatprep.subr.mxu0 0.0
  %510 = vmatpush1.msra.mxu0 0.0
  %511 = vmatprep.subr.mxu0 0.0
  %512 = vmatpush1.msra.mxu0 0.0
  %513 = vmatprep.subr.mxu0 0.0
  %514 = vmatpush1.msra.mxu0 0.0
  %515 = vmatprep.subr.mxu0 0.0
  %516 = vmatpush1.msra.mxu0 0.0
  %517 = vmatprep.subr.mxu0 0.0
  %518 = vmatpush1.msra.mxu0 0.0
  %519 = vmatprep.subr.mxu0 0.0
  %520 = vmatpush1.msra.mxu0 0.0
  %521 = vmatprep.subr.mxu0 0.0
  %522 = vmatpush1.msra.mxu0 0.0
  %523 = vmatprep.subr.mxu0 0.0
  %524 = vmatpush1.msra.mxu0 0.0
  %525 = vmatprep.subr.mxu0 0.0
  %526 = vmatpush1.msra.mxu0 0.0
  %527 = vmatprep.subr.mxu0 0.0
  %528 = vmatpush1.msra.mxu0 0.0
  %529 = vmatprep.subr.mxu0 0.0
  %530 = vmatpush1.msra.mxu0 0.0
  %531 = vmatprep.subr.mxu0 0.0
  %532 = vmatpush1.msra.mxu0 0.0
  %533 = vmatprep.subr.mxu0 0.0
  %534 = vmatpush1.msra.mxu0 0.0
  %535 = vmatprep.subr.mxu0 0.0
  %v536 = vand.u32 %v119, 4294901760
  %537 = vmatpush1.msra.mxu0 %v536
  %538 = vmatprep.subr.mxu0 0.0
  %539 = vmatpush2.msra.mxu0 0.0
  %540 = vmatprep.subr.mxu0 0.0
  %541 = vmatpush2.msra.mxu0 0.0
  %542 = vmatprep.subr.mxu0 0.0
  %543 = vmatpush2.msra.mxu0 0.0
  %544 = vmatprep.subr.mxu0 0.0
  %545 = vmatpush2.msra.mxu0 0.0
  %546 = vmatprep.subr.mxu0 0.0
  %547 = vmatpush2.msra.mxu0 0.0
  %548 = vmatprep.subr.mxu0 0.0
  %549 = vmatpush2.msra.mxu0 0.0
  %550 = vmatprep.subr.mxu0 0.0
  %551 = vmatpush2.msra.mxu0 0.0
  %552 = vmatprep.subr.mxu0 0.0
  %553 = vmatpush2.msra.mxu0 0.0
  %554 = vmatprep.subr.mxu0 0.0
  %555 = vmatpush2.msra.mxu0 0.0
  %556 = vmatprep.subr.mxu0 0.0
  %557 = vmatpush2.msra.mxu0 0.0
  %558 = vmatprep.subr.mxu0 0.0
  %559 = vmatpush2.msra.mxu0 0.0
  %560 = vmatprep.subr.mxu0 0.0
  %561 = vmatpush2.msra.mxu0 0.0
  %562 = vmatprep.subr.mxu0 0.0
  %563 = vmatpush2.msra.mxu0 0.0
  %564 = vmatprep.subr.mxu0 0.0
  %565 = vmatpush2.msra.mxu0 0.0
  %566 = vmatprep.subr.mxu0 0.0
  %567 = vmatpush2.msra.mxu0 0.0
  %568 = vmatprep.subr.mxu0 0.0
  %569 = vmatpush2.msra.mxu0 0.0
  %570 = vmatprep.mubr.f32.mxu0 0.0
  %v571 = vand.u32 %v129, 4294901760
  %572 = vmatmul.mubr.f32.gmra.mxu0 %v571
  %v573 = vpop.f32.mrf.mxu0
  %v574 = vadd.f32 %v502, %v573
  %v575 = vpop.f32.mrf.mxu0
  %576 = vdwg.mxu0
  %v577 = vmul.f32 %v574, 0.5
  %v578 = vtanh.pop %v577
  %v579 = vmul.f32 %v578, 0.5
  %v580 = vadd.f32 %v579, 0.5
  %581 = vst [vmem:[%s3] sm:$0xff] %v580
  // Predicated region
  $region14: #{model_forward.1} parent=0 // pred_check
    _
  $region15: #{model_forward.1} parent=0 // pred_check_branch
    %583 = sbr.rel (0) target = $region17
  $region16: #{model_forward.1} parent=0 // pred_region
    _
  $region17: #{model_forward.1} parent=0 // pred_fallthru
    _
  // Predicated region
  $region18: #{model_forward.1} parent=0 // pred_check
    _
  $region19: #{model_forward.1} parent=0 // pred_check_branch
    %585 = sbr.rel (0) target = $region21
  $region20: #{model_forward.1} parent=0 // pred_region
    _
  $region21: #{model_forward.1} parent=0 // pred_fallthru
    _

</llo_original>
